<compile_context>
chip_gen: v7x
topology: tpu7x:2x2x1
jax: 0.10.0
libtpu: 0.0.40
codegen_flags: <defaults>
</compile_context>

<pallas_src>
import functools

import jax
import jax.numpy as jnp
from jax import lax
from jax.experimental import pallas as pl
from jax.experimental.pallas import tpu as pltpu


def _round_up(v, m):
    return (v + m - 1) // m * m


def _vmem_capacity_bytes():
    """Per-core VMEM capacity (generation aware), with a safe fallback."""
    try:
        return int(pltpu.get_tpu_info().vmem_capacity_bytes)
    except Exception:
        return 64 * 1024 * 1024        # v7x-sized conservative default


def _vmem_footprint(tile_l, c_in_eff, c_out, halo_pad, w_elems,
                    in_itemsize, w_itemsize):
    """Approximate per-step VMEM bytes for an L-tile of width `tile_l`."""
    fixed = 2 * w_elems * w_itemsize                 # resident weights (x2 bufs)
    fixed += 2 * c_out * 4                           # resident shift
    fixed += 2 * c_in_eff * halo_pad * in_itemsize   # halo tile (double-buffered)
    per_lane = 2 * c_in_eff * in_itemsize            # input tile (double-buffered)
    per_lane += 2 * c_out * in_itemsize              # output tile (double-buffered)
    per_lane += c_out * 4                            # f32 accumulator
    per_lane += 2 * c_in_eff * 4                     # tap-assembly temporaries
    return fixed + per_lane * tile_l, per_lane, fixed


def _pick_tile_l(l_out, c_in_eff, c_out, halo_pad, w_elems,
                 in_itemsize, w_itemsize, budget):
    """Output-tile width along L (lanes): multiple of 128, fits the budget."""
    _, per_lane, fixed = _vmem_footprint(0, c_in_eff, c_out, halo_pad,
                                         w_elems, in_itemsize, w_itemsize)
    avail = budget - fixed
    if avail < per_lane * 128:
        cap = 128
    else:
        cap = (avail // per_lane) // 128 * 128
    target = 2048                     # >=512 lanes amortizes per-step overhead
    tile = min(target, cap, _round_up(l_out, 128))
    tile = max(128, tile // 128 * 128)
    if halo_pad:
        tile = max(halo_pad, _round_up(tile, halo_pad))
    return tile


def _dilated_conv_kernel(*refs, n_taps, dilation):
    """One (batch, L-tile) grid step.

    refs (n_taps > 1):  x_ref, halo_ref, w_ref, shift_ref, o_ref
    refs (n_taps == 1): x_ref, w_ref, shift_ref, o_ref

      x_ref:     (1, C_in_eff, TILE_L)     lane-major input tile
      halo_ref:  (1, C_in_eff, HALO_PAD)   columns just past the tile (same HBM
                                           array as x, second BlockSpec window)
      w_ref:     (n_taps, C_out, C_in_eff) BN-folded weights, tap-major
      shift_ref: (C_out, 1)                folded conv-bias + BN shift (f32)
      o_ref:     (1, C_out, TILE_L)        lane-dense output tile
    """
    if n_taps > 1:
        x_ref, halo_ref, w_ref, shift_ref, o_ref = refs
    else:
        x_ref, w_ref, shift_ref, o_ref = refs

    cur = x_ref[0]                                    # (C_in_eff, TILE_L)
    acc = jnp.dot(w_ref[0], cur, preferred_element_type=jnp.float32)

    if n_taps > 1:
        halo = halo_ref[0]                            # (C_in_eff, HALO_PAD)
        for kk in range(1, n_taps):
            off = kk * dilation
            # Tap kk = window shifted by kk*dilation lanes: tail of the current
            # tile plus the first `off` halo columns (no full-window copy).
            tap = jnp.concatenate([cur[:, off:], halo[:, :off]], axis=-1)
            acc = acc + jnp.dot(w_ref[kk], tap,
                                preferred_element_type=jnp.float32)

    y = acc + shift_ref[...]        # conv bias + eval-mode BatchNorm (folded)
    o_ref[0] = jnp.maximum(y, 0.0).astype(o_ref.dtype)   # ReLU


def dilated_conv_forward(x, weight, bias, bn_gamma, bn_beta, bn_mean, bn_var,
                         *, stride, dilation, padding, batch_norm, eps=1e-5,
                         tile_l=None):
    """x: (N, C_in, L) NCL like PyTorch Conv1d.  Returns (N, C_out, L_out)."""
    n, c_in, l_in = x.shape
    c_out, _, k = weight.shape
    l_out = (l_in + 2 * padding - dilation * (k - 1) - 1) // stride + 1
    assert l_out > 0, "empty output"

    # Fold conv bias + eval-mode BatchNorm into the weights / one shift (f32).
    w = weight.astype(jnp.float32)
    b = bias.astype(jnp.float32)
    if batch_norm:
        scale = bn_gamma.astype(jnp.float32) / jnp.sqrt(
            bn_var.astype(jnp.float32) + eps)
        shift = (b * scale + bn_beta.astype(jnp.float32)
                 - bn_mean.astype(jnp.float32) * scale)
        w = w * scale[:, None, None]
    else:
        shift = b
    shift2 = shift.reshape(c_out, 1)

    # bf16 inputs: feed bf16 operands to the MXU (accumulation stays f32).
    w_dtype = jnp.bfloat16 if x.dtype == jnp.bfloat16 else jnp.float32
    in_itemsize = x.dtype.itemsize
    w_itemsize = jnp.dtype(w_dtype).itemsize

    capacity = _vmem_capacity_bytes()
    budget = capacity // 4
    w_elems = k * c_out * c_in

    if stride == 1:
        n_taps = k
        c_in_eff = c_in
        halo = dilation * (k - 1)
        halo_pad = _round_up(halo, 128) if halo > 0 else 0
        tl = tile_l if tile_l is not None else _pick_tile_l(
            l_out, c_in_eff, c_out, halo_pad, w_elems,
            in_itemsize, w_itemsize, budget)
        # Keep both v7x TensorCores busy: grid axes are "parallel", so prefer
        # at least two grid steps when the problem allows it.
        if tile_l is None and n * pl.cdiv(l_out, tl) < 2 and l_out > 128:
            half = _round_up(pl.cdiv(l_out, 2), 128)
            if halo_pad:
                half = max(halo_pad, _round_up(half, halo_pad))
            tl = min(tl, half)
        assert tl % 128 == 0
        if halo_pad:
            assert tl % halo_pad == 0
        num_t = pl.cdiv(l_out, tl)
        l_total = num_t * tl + halo_pad
        # Single pad: conv zero-padding on the left, conv padding + block
        # round-up + halo (all zeros) on the right.
        x_full = jnp.pad(x, ((0, 0), (0, 0),
                             (padding, l_total - l_in - padding)))
        # (C_out, C_in, K) -> (K, C_out, C_in): one (C_out, C_in) matrix per tap.
        w_k = jnp.transpose(w, (2, 0, 1)).astype(w_dtype)
        operands = [x_full]
        in_specs = [pl.BlockSpec((1, c_in_eff, tl), lambda bb, tt: (bb, 0, tt))]
        if n_taps > 1:
            # Halo operand: the SAME padded array, re-windowed so each grid
            # step also sees the 128-aligned columns just past its tile.  No
            # host-side gather/transpose and no sub-tile micro-DMA.
            ratio = tl // halo_pad
            operands.append(x_full)
            in_specs.append(
                pl.BlockSpec((1, c_in_eff, halo_pad),
                             lambda bb, tt: (bb, 0, (tt + 1) * ratio)))
        halo_read_bytes = n * num_t * c_in_eff * halo_pad * in_itemsize
        x_read_bytes = x_full.size * in_itemsize + halo_read_bytes
    else:
        # stride > 1: gather the K taps on the host (im2col over taps) so the
        # kernel is one dense lane-major matmul with contraction K*C_in and no
        # strided VMEM loads.
        # TODO(synk): decimate in-kernel (strided pl.ds loads) instead, to
        # avoid this extra HBM round trip for long strided sequences.
        n_taps = 1
        c_in_eff = k * c_in
        halo_pad = 0
        x_pad = jnp.pad(x, ((0, 0), (0, 0), (padding, padding)))
        taps = [x_pad[:, :, j * dilation:
                      j * dilation + (l_out - 1) * stride + 1: stride]
                for j in range(k)]
        x_cols = jnp.concatenate(taps, axis=1)        # (N, K*C_in, L_out)
        # (C_out, C_in, K) -> (1, C_out, K*C_in), tap-major to match x_cols.
        w_k = jnp.transpose(w, (0, 2, 1)).reshape(1, c_out, c_in_eff)
        w_k = w_k.astype(w_dtype)
        tl = tile_l if tile_l is not None else _pick_tile_l(
            l_out, c_in_eff, c_out, halo_pad, w_elems,
            in_itemsize, w_itemsize, budget)
        if tile_l is None and n * pl.cdiv(l_out, tl) < 2 and l_out > 128:
            tl = min(tl, _round_up(pl.cdiv(l_out, 2), 128))
        assert tl % 128 == 0
        num_t = pl.cdiv(l_out, tl)
        operands = [x_cols]
        in_specs = [pl.BlockSpec((1, c_in_eff, tl), lambda bb, tt: (bb, 0, tt))]
        x_read_bytes = x_cols.size * in_itemsize

    operands += [w_k, shift2]
    in_specs += [
        pl.BlockSpec(w_k.shape, lambda bb, tt: (0, 0, 0)),   # resident weights
        pl.BlockSpec((c_out, 1), lambda bb, tt: (0, 0)),     # resident shift
    ]

    kernel = functools.partial(_dilated_conv_kernel, n_taps=n_taps,
                               dilation=dilation)

    # Declare the scoped-VMEM we need (v5e default is only 16 MiB) while
    # leaving headroom relative to physical VMEM (v7x: 64 MiB per core).
    need, _, _ = _vmem_footprint(tl, c_in_eff, c_out, halo_pad, w_elems,
                                 in_itemsize, w_itemsize)
    vmem_limit = int(min(capacity * 3 // 4, 64 * 1024 * 1024,
                         max(2 * need, 16 * 1024 * 1024)))

    cost = pl.CostEstimate(
        flops=int(2 * n * l_out * k * c_in * c_out),
        transcendentals=0,
        bytes_accessed=int(x_read_bytes
                           + n * c_out * l_out * in_itemsize
                           + w_k.size * w_itemsize + c_out * 4))

    out = pl.pallas_call(
        kernel,
        out_shape=jax.ShapeDtypeStruct((n, c_out, l_out), x.dtype),
        grid_spec=pltpu.PrefetchScalarGridSpec(
            num_scalar_prefetch=0,
            grid=(n, num_t),
            in_specs=in_specs,
            out_specs=pl.BlockSpec((1, c_out, tl), lambda bb, tt: (bb, 0, tt)),
        ),
        compiler_params=pltpu.CompilerParams(
            dimension_semantics=("parallel", "parallel"),
            vmem_limit_bytes=vmem_limit),
        cost_estimate=cost,
    )(*operands)
    return out


def _reference(x, weight, bias, scale, shift, *, stride, dilation, padding):
    y = lax.conv_general_dilated(
        x, weight,
        window_strides=(stride,),
        padding=[(padding, padding)],
        rhs_dilation=(dilation,),
        dimension_numbers=("NCH", "OIH", "NCH"))
    y = y + bias[None, :, None]
    y = y * scale[None, :, None] + shift[None, :, None]
    return jnp.maximum(y, 0.0)


if __name__ == "__main__":
    EPS = 1e-5

    def run_case(key, *, N, c_in, c_out, L, k, stride, dilation, padding,
                 batch_norm, tile_l=None, dtype=jnp.float32,
                 atol=1e-4, rtol=1e-4):
        kx, kw, kb, kg, kbt, km, kv = jax.random.split(key, 7)
        x = jax.random.normal(kx, (N, c_in, L), jnp.float32).astype(dtype)
        weight = jax.random.normal(kw, (c_out, c_in, k), jnp.float32) * 0.1
        bias = jax.random.normal(kb, (c_out,), jnp.float32) * 0.1
        bn_gamma = 1.0 + 0.1 * jax.random.normal(kg, (c_out,), jnp.float32)
        bn_beta = 0.1 * jax.random.normal(kbt, (c_out,), jnp.float32)
        bn_mean = 0.1 * jax.random.normal(km, (c_out,), jnp.float32)
        bn_var = jnp.abs(1.0 + 0.1 * jax.random.normal(kv, (c_out,), jnp.float32))

        out = dilated_conv_forward(
            x, weight, bias, bn_gamma, bn_beta, bn_mean, bn_var,
            stride=stride, dilation=dilation, padding=padding,
            batch_norm=batch_norm, tile_l=tile_l)
        out = jax.block_until_ready(out)

        if batch_norm:
            scale = bn_gamma / jnp.sqrt(bn_var + EPS)
            shift = bn_beta - bn_mean * scale
        else:
            scale = jnp.ones((c_out,), jnp.float32)
            shift = jnp.zeros((c_out,), jnp.float32)
        ref = _reference(x.astype(jnp.float32), weight, bias, scale, shift,
                         stride=stride, dilation=dilation, padding=padding)
        assert out.shape == ref.shape, (out.shape, ref.shape)
        assert out.dtype == dtype
        outf = out.astype(jnp.float32)
        err = float(jnp.max(jnp.abs(outf - ref)))
        assert jnp.allclose(outf, ref, atol=atol, rtol=rtol), err

    key = jax.random.PRNGKey(0)
    key1, key2, key3, key4 = jax.random.split(key, 4)

    # Case 1: module config DilatedConv(4, 8, 3, stride=1, dilation=2,
    #         padding=2, batch_norm=True) on a (2, 4, 16) input.
    run_case(key1, N=2, c_in=4, c_out=8, L=16, k=3, stride=1, dilation=2,
             padding=2, batch_norm=True)
    # Case 2: strided conv without batch norm (host tap-gather fallback path).
    run_case(key2, N=2, c_in=4, c_out=8, L=16, k=3, stride=2, dilation=2,
             padding=2, batch_norm=False)
    # Case 3: longer sequence with a forced 128-wide tile so the L grid axis,
    # the in-place halo window and the partial last output tile are exercised.
    run_case(key3, N=2, c_in=4, c_out=8, L=400, k=3, stride=1, dilation=2,
             padding=2, batch_norm=True, tile_l=128)
    # Case 4: bf16 activations/weights feeding the native bf16 MXU path.
    run_case(key4, N=2, c_in=4, c_out=8, L=256, k=3, stride=1, dilation=2,
             padding=2, batch_norm=True, dtype=jnp.bfloat16,
             atol=5e-2, rtol=5e-2)

    print("KERNEL_OK")
</pallas_src>

<mosaic_0001>
module attributes {stable_mosaic.version = 11 : i64} {
  func.func @_dilated_conv_kernel(%arg0: i32, %arg1: i32, %arg2: memref<1x4x128xf32, #tpu.memory_space<vmem>>, %arg3: memref<1x4x128xf32, #tpu.memory_space<vmem>>, %arg4: memref<3x8x4xf32, #tpu.memory_space<vmem>>, %arg5: memref<8x1xf32, #tpu.memory_space<vmem>>, %arg6: memref<1x8x128xf32, #tpu.memory_space<vmem>>) attributes {dimension_semantics = [#tpu.dimension_semantics<parallel>, #tpu.dimension_semantics<parallel>], iteration_bounds = array<i64: 2, 1>, scalar_prefetch = 0 : i64, scratch_operands = 0 : i64, tpu.core_type = #tpu.core_type<tc>, window_params = [{transform_indices = @transform_0, window_bounds = array<i64: 1, 4, 128>}, {transform_indices = @transform_1, window_bounds = array<i64: 1, 4, 128>}, {pipeline_mode = #tpu.pipeline_mode<synchronous>, transform_indices = @transform_2, window_bounds = array<i64: 3, 8, 4>}, {pipeline_mode = #tpu.pipeline_mode<synchronous>, transform_indices = @transform_3, window_bounds = array<i64: 8, 1>}, {transform_indices = @transform_4, window_bounds = array<i64: 1, 8, 128>}]} {
    %c0 = arith.constant 0 : index
    %c0_0 = arith.constant 0 : index
    %c0_1 = arith.constant 0 : index
    %0 = vector.load %arg2[%c0, %c0_0, %c0_1] : memref<1x4x128xf32, #tpu.memory_space<vmem>>, vector<1x4x128xf32>
    %1 = vector.shape_cast %0 : vector<1x4x128xf32> to vector<4x128xf32>
    %c0_2 = arith.constant 0 : index
    %c0_3 = arith.constant 0 : index
    %c0_4 = arith.constant 0 : index
    %2 = vector.load %arg4[%c0_2, %c0_3, %c0_4] : memref<3x8x4xf32, #tpu.memory_space<vmem>>, vector<1x8x4xf32>
    %3 = vector.shape_cast %2 : vector<1x8x4xf32> to vector<8x4xf32>
    %cst = arith.constant dense<0.000000e+00> : vector<8x128xf32>
    %4 = tpu.matmul %3, %1, %cst {dimension_numbers = #tpu.dot_dimension_numbers<[1], [0], [0], [1], [0, 0, 1, 1], [], []>} : vector<8x4xf32>, vector<4x128xf32>, vector<8x128xf32> -> vector<8x128xf32>
    %c0_5 = arith.constant 0 : index
    %c0_6 = arith.constant 0 : index
    %c0_7 = arith.constant 0 : index
    %5 = vector.load %arg3[%c0_5, %c0_6, %c0_7] : memref<1x4x128xf32, #tpu.memory_space<vmem>>, vector<1x4x128xf32>
    %6 = vector.shape_cast %5 : vector<1x4x128xf32> to vector<4x128xf32>
    %7 = vector.extract_strided_slice %1 {offsets = [0, 2], sizes = [4, 126], strides = [1, 1]} : vector<4x128xf32> to vector<4x126xf32>
    %8 = vector.extract_strided_slice %6 {offsets = [0, 0], sizes = [4, 2], strides = [1, 1]} : vector<4x128xf32> to vector<4x2xf32>
    %9 = tpu.concatenate %7, %8 in 1 : vector<4x126xf32>, vector<4x2xf32> -> vector<4x128xf32>
    %c1 = arith.constant 1 : index
    %c0_8 = arith.constant 0 : index
    %c0_9 = arith.constant 0 : index
    %10 = vector.load %arg4[%c1, %c0_8, %c0_9] : memref<3x8x4xf32, #tpu.memory_space<vmem>>, vector<1x8x4xf32>
    %11 = vector.shape_cast %10 : vector<1x8x4xf32> to vector<8x4xf32>
    %cst_10 = arith.constant dense<0.000000e+00> : vector<8x128xf32>
    %12 = tpu.matmul %11, %9, %cst_10 {dimension_numbers = #tpu.dot_dimension_numbers<[1], [0], [0], [1], [0, 0, 1, 1], [], []>} : vector<8x4xf32>, vector<4x128xf32>, vector<8x128xf32> -> vector<8x128xf32>
    %13 = arith.addf %4, %12 : vector<8x128xf32>
    %14 = vector.extract_strided_slice %1 {offsets = [0, 4], sizes = [4, 124], strides = [1, 1]} : vector<4x128xf32> to vector<4x124xf32>
    %15 = vector.extract_strided_slice %6 {offsets = [0, 0], sizes = [4, 4], strides = [1, 1]} : vector<4x128xf32> to vector<4x4xf32>
    %16 = tpu.concatenate %14, %15 in 1 : vector<4x124xf32>, vector<4x4xf32> -> vector<4x128xf32>
    %c2 = arith.constant 2 : index
    %c0_11 = arith.constant 0 : index
    %c0_12 = arith.constant 0 : index
    %17 = vector.load %arg4[%c2, %c0_11, %c0_12] : memref<3x8x4xf32, #tpu.memory_space<vmem>>, vector<1x8x4xf32>
    %18 = vector.shape_cast %17 : vector<1x8x4xf32> to vector<8x4xf32>
    %cst_13 = arith.constant dense<0.000000e+00> : vector<8x128xf32>
    %19 = tpu.matmul %18, %16, %cst_13 {dimension_numbers = #tpu.dot_dimension_numbers<[1], [0], [0], [1], [0, 0, 1, 1], [], []>} : vector<8x4xf32>, vector<4x128xf32>, vector<8x128xf32> -> vector<8x128xf32>
    %20 = arith.addf %13, %19 : vector<8x128xf32>
    %c0_14 = arith.constant 0 : index
    %c0_15 = arith.constant 0 : index
    %21 = vector.load %arg5[%c0_14, %c0_15] : memref<8x1xf32, #tpu.memory_space<vmem>>, vector<8x1xf32>
    %22 = vector.broadcast %21 : vector<8x1xf32> to vector<8x128xf32>
    %23 = arith.addf %20, %22 : vector<8x128xf32>
    %cst_16 = arith.constant 0.000000e+00 : f32
    %24 = vector.broadcast %cst_16 : f32 to vector<8x128xf32>
    %25 = arith.maximumf %23, %24 : vector<8x128xf32>
    %c0_17 = arith.constant 0 : index
    %c0_18 = arith.constant 0 : index
    %c0_19 = arith.constant 0 : index
    %26 = vector.load %arg6[%c0_17, %c0_18, %c0_19] : memref<1x8x128xf32, #tpu.memory_space<vmem>>, vector<1x8x128xf32>
    %27 = vector.shape_cast %26 : vector<1x8x128xf32> to vector<8x128xf32>
    %28 = vector.shape_cast %25 : vector<8x128xf32> to vector<1x8x128xf32>
    tpu.vector_store %arg6[%c0_17, %c0_18, %c0_19], %28 {strides = array<i32>} : memref<1x8x128xf32, #tpu.memory_space<vmem>>, vector<1x8x128xf32>,
    return
  }
  func.func @transform_0(%arg0: i32, %arg1: i32) -> (i32, i32, i32) {
    %c0_i32 = arith.constant 0 : i32
    %c0_i32_0 = arith.constant 0 : i32
    return %arg0, %c0_i32, %arg1 : i32, i32, i32
  }
  func.func @transform_1(%arg0: i32, %arg1: i32) -> (i32, i32, i32) {
    %c1_i32 = arith.constant 1 : i32
    %0 = arith.addi %arg1, %c1_i32 : i32
    %c1_i32_0 = arith.constant 1 : i32
    %1 = arith.muli %0, %c1_i32_0 : i32
    %c0_i32 = arith.constant 0 : i32
    %c0_i32_1 = arith.constant 0 : i32
    return %arg0, %c0_i32, %1 : i32, i32, i32
  }
  func.func @transform_2(%arg0: i32, %arg1: i32) -> (i32, i32, i32) {
    %c0_i32 = arith.constant 0 : i32
    %c0_i32_0 = arith.constant 0 : i32
    %c0_i32_1 = arith.constant 0 : i32
    %c0_i32_2 = arith.constant 0 : i32
    return %c0_i32, %c0_i32_0, %c0_i32_1 : i32, i32, i32
  }
  func.func @transform_3(%arg0: i32, %arg1: i32) -> (i32, i32) {
    %c0_i32 = arith.constant 0 : i32
    %c0_i32_0 = arith.constant 0 : i32
    %c0_i32_1 = arith.constant 0 : i32
    return %c0_i32, %c0_i32_0 : i32, i32
  }
  func.func @transform_4(%arg0: i32, %arg1: i32) -> (i32, i32, i32) {
    %c0_i32 = arith.constant 0 : i32
    %c0_i32_0 = arith.constant 0 : i32
    return %arg0, %c0_i32, %arg1 : i32, i32, i32
  }
}

</mosaic_0001>

<llo_original>
// kernel: tpu_custom_call.1
$region0: #{tpu_custom_call.1}
  #allocation0 [shape = 'u32[]', space=smem, size = 0x4, offset = 0x4, fixed_abs, tag = 'smem constant byte address 0x4 - core index']
  #allocation1 [shape = 'u32[144,128]{1,0:T(1,128)}', space=vmem, size = 0x12000, scoped, tag = 'internal scratch']
  %s0 = inlined_call_operand.vmem [shape: f32[2,4,256], index: 0, kind: input, shape index: {}]
  %s1 = inlined_call_operand.vmem [shape: f32[2,4,256], index: 1, kind: input, shape index: {}]
  %s2 = inlined_call_operand.vmem [shape: f32[3,8,4], index: 2, kind: input, shape index: {}]
  %s3 = inlined_call_operand.vmem [shape: f32[8,1], index: 3, kind: input, shape index: {}]
  %s4 = inlined_call_operand.hbm [shape: f32[2,8,16], index: 4, kind: output, shape index: {}]
  %s5 = sld [smem:[#allocation0]]
  $region49: #{tpu_custom_call.1} parent=0
    _
  %s7 = ssub.s32 1, %s5
  %s8 = scalar_select 0, %s7, %s5
  $region1: #{tpu_custom_call.1} parent=0
    #allocation2 [shape = 'u8[8192]{0}', space=vmem, size = 0x2000, scoped, tag = 'output window, operand 0']
    #allocation3 [shape = 's32[2]{0}', space=sflag, size = 0x8, scoped, tag = 'scoped memory for tpu_custom_call.1']
    %9 = vsyncpa [#allocation3], 0
    %s10 = scalar_lea.sflag [#allocation3], 1
    %11 = vsyncpa %s10, 0
    loop: start=0, step=1, limit=4
    $region2: #{tpu_custom_call.1} parent=1 // loop_pre_header
      _
    $region3: #{tpu_custom_call.1} parent=1 // loop_header
      %s13 = sphi 0, %s17
      %p14 = scmp.ge.s32.totalorder %s13, 4
      %s20 = sphi 0, %s32
      %s21 = sphi 0, %s28
      %s22 = sphi 0, %s20
      %s23 = sphi 0, %s21
      %s24 = sphi 0, %s22
      %s25 = sphi 0, %s23
      %s37 = sphi 0, %s39
      %s40 = sphi 0, %s37
      %s41 = sphi 0, %s40
      %s57 = sphi 0, %s41
      %s67 = sphi 0, %s69
      %s70 = sphi 0, %s67
      %s71 = sphi 0, %s70
      %s87 = sphi 0, %s71
      %s91 = sphi 0, %s91
      %s93 = sphi 0, %s91
      %s94 = sphi 0, %s93
      %s108 = sphi 0, %s94
      %s112 = sphi 0, %s112
      %s114 = sphi 0, %s112
      %s115 = sphi 0, %s114
      %s129 = sphi 0, %s115
      %s137 = sphi 0, %s139
      %s140 = sphi 0, %s137
      %s141 = sphi 0, %s140
      %s157 = sphi 0, %s141
    $region4: #{tpu_custom_call.1} parent=1 // loop_header_branch
      %16 = sbr.rel (%p14) target = $region8
    $region5: #{tpu_custom_call.1} parent=1 // loop_body
      %s18 = ssub.s32 %s13, 1
      %s19 = ssub.s32 %s13, 2
      %s26 = sadd.s32 1, %s21
      %p27 = scmp.ge.s32.totalorder %s26, 1
      %s28 = scalar_select %p27, 0, %s26
      %s29 = sadd.s32 1, %s20
      %s30 = scalar_select %p27, %s29, %s20
      %p31 = scmp.ge.s32.totalorder %s30, 2
      %s32 = scalar_select %p31, 0, %s30
      %s33 = ssub.s32 %s20, %s32
      %s34 = ssub.s32 %s21, %s28
      %s35 = sor.u32 %s33, %s34
      %p36 = scmp.eq.s32.totalorder %s35, 0
      %s38 = sadd.s32 %s37, 1
      %s39 = scalar_select %p36, %s37, %s38
      %p42 = pneg %p36
      %p43 = scmp.eq.s32.totalorder %s13, 1
      %p44 = por %p42, %p43
      %p45 = scmp.ne.s32.totalorder %s37, %s40
      %p46 = scmp.eq.s32.totalorder %s13, 0
      %p47 = por %p45, %p46
      %p48 = scmp.ne.s32.totalorder %s37, %s40
      %p49 = scmp.eq.s32.totalorder %s18, 1
      %p50 = por %p48, %p49
      %p51 = scmp.ne.s32.totalorder %s40, %s41
      %p52 = scmp.eq.s32.totalorder %s18, 0
      %p53 = por %p51, %p52
      %p54 = scmp.ne.s32.totalorder %s40, %s41
      %p55 = scmp.eq.s32.totalorder %s19, 1
      %p56 = por %p54, %p55
      %p58 = scmp.ne.s32.totalorder %s41, %s57
      %p59 = scmp.eq.s32.totalorder %s19, 0
      %p60 = por %p58, %p59
      %s61 = sadd.s32 %s21, 1
      %s62 = sadd.s32 %s28, 1
      %s63 = ssub.s32 %s20, %s32
      %s64 = ssub.s32 %s61, %s62
      %s65 = sor.u32 %s63, %s64
      %p66 = scmp.eq.s32.totalorder %s65, 0
      %s68 = sadd.s32 %s67, 1
      %s69 = scalar_select %p66, %s67, %s68
      %p72 = pneg %p66
      %p73 = scmp.eq.s32.totalorder %s13, 1
      %p74 = por %p72, %p73
      %p75 = scmp.ne.s32.totalorder %s67, %s70
      %p76 = scmp.eq.s32.totalorder %s13, 0
      %p77 = por %p75, %p76
      %p78 = scmp.ne.s32.totalorder %s67, %s70
      %p79 = scmp.eq.s32.totalorder %s18, 1
      %p80 = por %p78, %p79
      %p81 = scmp.ne.s32.totalorder %s70, %s71
      %p82 = scmp.eq.s32.totalorder %s18, 0
      %p83 = por %p81, %p82
      %p84 = scmp.ne.s32.totalorder %s70, %s71
      %p85 = scmp.eq.s32.totalorder %s19, 1
      %p86 = por %p84, %p85
      %p88 = scmp.ne.s32.totalorder %s71, %s87
      %p89 = scmp.eq.s32.totalorder %s19, 0
      %p90 = por %p88, %p89
      %s92 = sadd.s32 %s91, 1
      %p95 = scmp.eq.s32.totalorder %s13, 1
      %p96 = scmp.ne.s32.totalorder %s91, %s93
      %p97 = scmp.eq.s32.totalorder %s13, 0
      %p98 = por %p96, %p97
      %p99 = scmp.ne.s32.totalorder %s91, %s93
      %p100 = scmp.eq.s32.totalorder %s18, 1
      %p101 = por %p99, %p100
      %p102 = scmp.ne.s32.totalorder %s93, %s94
      %p103 = scmp.eq.s32.totalorder %s18, 0
      %p104 = por %p102, %p103
      %p105 = scmp.ne.s32.totalorder %s93, %s94
      %p106 = scmp.eq.s32.totalorder %s19, 1
      %p107 = por %p105, %p106
      %p109 = scmp.ne.s32.totalorder %s94, %s108
      %p110 = scmp.eq.s32.totalorder %s19, 0
      %p111 = por %p109, %p110
      %s113 = sadd.s32 %s112, 1
      %p116 = scmp.eq.s32.totalorder %s13, 1
      %p117 = scmp.ne.s32.totalorder %s112, %s114
      %p118 = scmp.eq.s32.totalorder %s13, 0
      %p119 = por %p117, %p118
      %p120 = scmp.ne.s32.totalorder %s112, %s114
      %p121 = scmp.eq.s32.totalorder %s18, 1
      %p122 = por %p120, %p121
      %p123 = scmp.ne.s32.totalorder %s114, %s115
      %p124 = scmp.eq.s32.totalorder %s18, 0
      %p125 = por %p123, %p124
      %p126 = scmp.ne.s32.totalorder %s114, %s115
      %p127 = scmp.eq.s32.totalorder %s19, 1
      %p128 = por %p126, %p127
      %p130 = scmp.ne.s32.totalorder %s115, %s129
      %p131 = scmp.eq.s32.totalorder %s19, 0
      %p132 = por %p130, %p131
      %s133 = ssub.s32 %s20, %s32
      %s134 = ssub.s32 %s21, %s28
      %s135 = sor.u32 %s133, %s134
      %p136 = scmp.eq.s32.totalorder %s135, 0
      %s138 = sadd.s32 %s137, 1
      %s139 = scalar_select %p136, %s137, %s138
      %p142 = pneg %p136
      %p143 = scmp.eq.s32.totalorder %s13, 1
      %p144 = por %p142, %p143
      %p145 = scmp.ne.s32.totalorder %s137, %s140
      %p146 = scmp.eq.s32.totalorder %s13, 0
      %p147 = por %p145, %p146
      %p148 = scmp.ne.s32.totalorder %s137, %s140
      %p149 = scmp.eq.s32.totalorder %s18, 1
      %p150 = por %p148, %p149
      %p151 = scmp.ne.s32.totalorder %s140, %s141
      %p152 = scmp.eq.s32.totalorder %s18, 0
      %p153 = por %p151, %p152
      %p154 = scmp.ne.s32.totalorder %s140, %s141
      %p155 = scmp.eq.s32.totalorder %s19, 1
      %p156 = por %p154, %p155
      %p158 = scmp.ne.s32.totalorder %s141, %s157
      %p159 = scmp.eq.s32.totalorder %s19, 0
      %p160 = por %p158, %p159
      %p161 = scmp.le.s32.totalorder 1, %s13
      %p162 = scmp.lt.s32.totalorder %s13, 3
      %p163 = pnand %p161, %p162
      %p164 = pneg %p163
      // Predicated region
      $region9: #{tpu_custom_call.1} parent=5 // pred_check
        _
      $region10: #{tpu_custom_call.1} parent=5 // pred_check_branch
        %166 = sbr.rel (%p163) target = $region12
      $region11: #{tpu_custom_call.1} parent=5 // pred_region
        %s167 = ssub.s32 %s13, 1
        // Predicated region
        $region13: #{tpu_custom_call.1} parent=11 // pred_check
          %p168 = pneg %p104
        $region14: #{tpu_custom_call.1} parent=11 // pred_check_branch
          %170 = sbr.rel (%p168) target = $region16
        $region15: #{tpu_custom_call.1} parent=11 // pred_region
          _
        $region16: #{tpu_custom_call.1} parent=11 // pred_fallthru
          _
        // Predicated region
        $region17: #{tpu_custom_call.1} parent=11 // pred_check
          %p171 = pneg %p125
        $region18: #{tpu_custom_call.1} parent=11 // pred_check_branch
          %173 = sbr.rel (%p171) target = $region20
        $region19: #{tpu_custom_call.1} parent=11 // pred_region
          _
        $region20: #{tpu_custom_call.1} parent=11 // pred_fallthru
          _
      $region12: #{tpu_custom_call.1} parent=5 // pred_fallthru
        _
      %p174 = scmp.lt.s32.totalorder %s13, 2
      // Predicated region
      $region21: #{tpu_custom_call.1} parent=5 // pred_check
        %p175 = pneg %p174
      $region22: #{tpu_custom_call.1} parent=5 // pred_check_branch
        %177 = sbr.rel (%p175) target = $region24
      $region23: #{tpu_custom_call.1} parent=5 // pred_region
        // Predicated region
        $region25: #{tpu_custom_call.1} parent=23 // pred_check
          %p178 = pneg %p47
        $region26: #{tpu_custom_call.1} parent=23 // pred_check_branch
          %180 = sbr.rel (%p178) target = $region28
        $region27: #{tpu_custom_call.1} parent=23 // pred_region
          %p181 = scmp.lt.s32.totalorder %s20, 1
          %s182 = scalar_select %p181, %s20, 1
          %p183 = scmp.lt.s32.totalorder %s21, 1
          %s184 = scalar_select %p183, %s21, 1
          %s185 = smul.addr %s182, 2
          %s186 = sadd.s32 %s184, %s185
          %s187 = smul.addr %s186, 4
          %s188 = scalar_lea.vmem %s0, %s187
        $region28: #{tpu_custom_call.1} parent=23 // pred_fallthru
          _
        // Predicated region
        $region29: #{tpu_custom_call.1} parent=23 // pred_check
          %p189 = pneg %p77
        $region30: #{tpu_custom_call.1} parent=23 // pred_check_branch
          %191 = sbr.rel (%p189) target = $region32
        $region31: #{tpu_custom_call.1} parent=23 // pred_region
          %s192 = sadd.s32 %s21, 1
          %p193 = scmp.lt.s32.totalorder %s20, 1
          %s194 = scalar_select %p193, %s20, 1
          %p195 = scmp.lt.s32.totalorder %s192, 1
          %s196 = scalar_select %p195, %s192, 1
          %s197 = smul.addr %s194, 2
          %s198 = sadd.s32 %s196, %s197
          %s199 = smul.addr %s198, 4
          %s200 = scalar_lea.vmem %s1, %s199
          %s201 = sadd.s32 %s21, 1
        $region32: #{tpu_custom_call.1} parent=23 // pred_fallthru
          _
      $region24: #{tpu_custom_call.1} parent=5 // pred_fallthru
        _
      %p202 = scmp.le.s32.totalorder 1, %s13
      %p203 = scmp.lt.s32.totalorder %s13, 3
      %p204 = pnand %p202, %p203
      %p205 = pneg %p204
      // Predicated region
      $region33: #{tpu_custom_call.1} parent=5 // pred_check
        _
      $region34: #{tpu_custom_call.1} parent=5 // pred_check_branch
        %207 = sbr.rel (%p204) target = $region36
      $region35: #{tpu_custom_call.1} parent=5 // pred_region
        %s208 = ssub.s32 %s13, 1
        %p209 = scmp.lt.s32.totalorder %s22, 1
        %s210 = scalar_select %p209, %s22, 1
        %p211 = scmp.lt.s32.totalorder %s23, 1
        %s212 = scalar_select %p211, %s23, 1
        %s213 = smul.addr %s210, 2
        %s214 = sadd.s32 %s212, %s213
        %s215 = smul.addr %s214, 4
        %s216 = scalar_lea.vmem %s0, %s215
        %p217 = pneg %p53
        %p218 = pneg %p50
        %s219 = sadd.s32 %s23, 1
        %p220 = scmp.lt.s32.totalorder %s22, 1
        %s221 = scalar_select %p220, %s22, 1
        %p222 = scmp.lt.s32.totalorder %s219, 1
        %s223 = scalar_select %p222, %s219, 1
        %s224 = smul.addr %s221, 2
        %s225 = sadd.s32 %s223, %s224
        %s226 = smul.addr %s225, 4
        %s227 = scalar_lea.vmem %s1, %s226
        %p228 = pneg %p83
        %p229 = pneg %p80
        %p230 = pneg %p104
        %p231 = pneg %p101
        %p232 = pneg %p125
        %p233 = pneg %p122
        %p234 = pneg %p153
        %p235 = pneg %p150
        %s236 = sand.u32 %s140, 1
        %s237 = scalar_lea.sflag [#allocation3], %s236
        %s238 = sand.u32 %s140, 1
        %s239 = smul.addr %s238, 8
        %s240 = scalar_lea.vmem [#allocation2], %s239
        %p241 = scmp.lt.s32.totalorder %s22, 1
        %s242 = scalar_select %p241, %s22, 1
        %p243 = scmp.lt.s32.totalorder %s23, 1
        %s244 = scalar_select %p243, %s23, 1
        %s245 = smul.addr %s242, 2
        %s246 = sadd.s32 %s244, %s245
        %s247 = smul.addr %s246, 4
        %s248 = scalar_lea.vmem %s0, %s247
        %s249 = sadd.s32 %s23, 1
        %p250 = scmp.lt.s32.totalorder %s22, 1
        %s251 = scalar_select %p250, %s22, 1
        %p252 = scmp.lt.s32.totalorder %s249, 1
        %s253 = scalar_select %p252, %s249, 1
        %s254 = smul.addr %s251, 2
        %s255 = sadd.s32 %s253, %s254
        %s256 = smul.addr %s255, 4
        %s257 = scalar_lea.vmem %s1, %s256
        %s258 = sadd.s32 %s23, 1
        %v259 = vld [vmem:[%s248] sm:$0xf]
        %v260 = vld [vmem:[%s2] sm:$0xff]
        %v261 = vld [vmem:[%s257] sm:$0xf]
        %263 = vrot.lane.b32.xlu0 %v259, 126
        %v264 = vpop.permute.xlu0 %263
        %267 = vrot.lane.b32.xlu0 %v261, 126
        %v268 = vpop.permute.xlu0 %267
        %vm270 = vcmask 1031168
        %v271 = vsel %vm270, %v264, %v268
        %s272 = scalar_lea.vmem %s2, 8
        %v273 = vld [vmem:[%s272] sm:$0xff]
        %vm274 = vcmask 31744
        %v276 = vsel %vm274, %v273, 0
        %vm278 = vcmask 1043456
        %v280 = vsel %vm278, %v271, 0
        %282 = vmatprep.subr.mxu0 0.0
        %283 = vmatpush1.msra.mxu0 %v280
        %284 = vmatprep.subr.mxu0 0.0
        %285 = vmatpush1.msra.mxu0 0.0
        %286 = vmatprep.subr.mxu0 0.0
        %287 = vmatpush1.msra.mxu0 0.0
        %288 = vmatprep.subr.mxu0 0.0
        %289 = vmatpush1.msra.mxu0 0.0
        %290 = vmatprep.subr.mxu0 0.0
        %291 = vmatpush1.msra.mxu0 0.0
        %292 = vmatprep.subr.mxu0 0.0
        %293 = vmatpush1.msra.mxu0 0.0
        %294 = vmatprep.subr.mxu0 0.0
        %295 = vmatpush1.msra.mxu0 0.0
        %296 = vmatprep.subr.mxu0 0.0
        %297 = vmatpush1.msra.mxu0 0.0
        %298 = vmatprep.subr.mxu0 0.0
        %299 = vmatpush1.msra.mxu0 0.0
        %300 = vmatprep.subr.mxu0 0.0
        %301 = vmatpush1.msra.mxu0 0.0
        %302 = vmatprep.subr.mxu0 0.0
        %303 = vmatpush1.msra.mxu0 0.0
        %304 = vmatprep.subr.mxu0 0.0
        %305 = vmatpush1.msra.mxu0 0.0
        %306 = vmatprep.subr.mxu0 0.0
        %307 = vmatpush1.msra.mxu0 0.0
        %308 = vmatprep.subr.mxu0 0.0
        %309 = vmatpush1.msra.mxu0 0.0
        %310 = vmatprep.subr.mxu0 0.0
        %311 = vmatpush1.msra.mxu0 0.0
        %312 = vmatprep.subr.mxu0 0.0
        %313 = vmatpush1.msra.mxu0 0.0
        %314 = vmatprep.subr.mxu0 0.0
        %315 = vmatpush1.msra.mxu0 0.0
        %316 = vmatprep.subr.mxu0 0.0
        %317 = vmatpush1.msra.mxu0 0.0
        %318 = vmatprep.subr.mxu0 0.0
        %319 = vmatpush1.msra.mxu0 0.0
        %320 = vmatprep.subr.mxu0 0.0
        %321 = vmatpush1.msra.mxu0 0.0
        %322 = vmatprep.subr.mxu0 0.0
        %323 = vmatpush1.msra.mxu0 0.0
        %324 = vmatprep.subr.mxu0 0.0
        %325 = vmatpush1.msra.mxu0 0.0
        %326 = vmatprep.subr.mxu0 0.0
        %327 = vmatpush1.msra.mxu0 0.0
        %328 = vmatprep.subr.mxu0 0.0
        %329 = vmatpush1.msra.mxu0 0.0
        %330 = vmatprep.subr.mxu0 0.0
        %331 = vmatpush1.msra.mxu0 0.0
        %332 = vmatprep.subr.mxu0 0.0
        %333 = vmatpush1.msra.mxu0 0.0
        %334 = vmatprep.subr.mxu0 0.0
        %335 = vmatpush1.msra.mxu0 0.0
        %336 = vmatprep.subr.mxu0 0.0
        %337 = vmatpush1.msra.mxu0 0.0
        %338 = vmatprep.subr.mxu0 0.0
        %339 = vmatpush1.msra.mxu0 0.0
        %340 = vmatprep.subr.mxu0 0.0
        %341 = vmatpush1.msra.mxu0 0.0
        %342 = vmatprep.subr.mxu0 0.0
        %343 = vmatpush1.msra.mxu0 0.0
        %344 = vmatprep.subr.mxu0 0.0
        %345 = vmatpush1.msra.mxu0 0.0
        %346 = vmatprep.mubr.f32.mxu0 0.0
        %347 = vmatmul.mubr.f32.gmra.mrb[0].mxu0 %v276
        %v348 = vpop.f32.mrb[0].mxu0
        %v349 = vadd.f32 0.0, %v348
        %v350 = vpop.f32.mrb[0].mxu0
        %351 = vdwg.mxu0
        %v353 = vsel %vm274, %v260, 0
        %v355 = vsel %vm278, %v259, 0
        %357 = vmatprep.subr.mxu0 0.0
        %358 = vmatpush1.msra.mxu0 %v355
        %359 = vmatprep.subr.mxu0 0.0
        %360 = vmatpush1.msra.mxu0 0.0
        %361 = vmatprep.subr.mxu0 0.0
        %362 = vmatpush1.msra.mxu0 0.0
        %363 = vmatprep.subr.mxu0 0.0
        %364 = vmatpush1.msra.mxu0 0.0
        %365 = vmatprep.subr.mxu0 0.0
        %366 = vmatpush1.msra.mxu0 0.0
        %367 = vmatprep.subr.mxu0 0.0
        %368 = vmatpush1.msra.mxu0 0.0
        %369 = vmatprep.subr.mxu0 0.0
        %370 = vmatpush1.msra.mxu0 0.0
        %371 = vmatprep.subr.mxu0 0.0
        %372 = vmatpush1.msra.mxu0 0.0
        %373 = vmatprep.subr.mxu0 0.0
        %374 = vmatpush1.msra.mxu0 0.0
        %375 = vmatprep.subr.mxu0 0.0
        %376 = vmatpush1.msra.mxu0 0.0
        %377 = vmatprep.subr.mxu0 0.0
        %378 = vmatpush1.msra.mxu0 0.0
        %379 = vmatprep.subr.mxu0 0.0
        %380 = vmatpush1.msra.mxu0 0.0
        %381 = vmatprep.subr.mxu0 0.0
        %382 = vmatpush1.msra.mxu0 0.0
        %383 = vmatprep.subr.mxu0 0.0
        %384 = vmatpush1.msra.mxu0 0.0
        %385 = vmatprep.subr.mxu0 0.0
        %386 = vmatpush1.msra.mxu0 0.0
        %387 = vmatprep.subr.mxu0 0.0
        %388 = vmatpush1.msra.mxu0 0.0
        %389 = vmatprep.subr.mxu0 0.0
        %390 = vmatpush1.msra.mxu0 0.0
        %391 = vmatprep.subr.mxu0 0.0
        %392 = vmatpush1.msra.mxu0 0.0
        %393 = vmatprep.subr.mxu0 0.0
        %394 = vmatpush1.msra.mxu0 0.0
        %395 = vmatprep.subr.mxu0 0.0
        %396 = vmatpush1.msra.mxu0 0.0
        %397 = vmatprep.subr.mxu0 0.0
        %398 = vmatpush1.msra.mxu0 0.0
        %399 = vmatprep.subr.mxu0 0.0
        %400 = vmatpush1.msra.mxu0 0.0
        %401 = vmatprep.subr.mxu0 0.0
        %402 = vmatpush1.msra.mxu0 0.0
        %403 = vmatprep.subr.mxu0 0.0
        %404 = vmatpush1.msra.mxu0 0.0
        %405 = vmatprep.subr.mxu0 0.0
        %406 = vmatpush1.msra.mxu0 0.0
        %407 = vmatprep.subr.mxu0 0.0
        %408 = vmatpush1.msra.mxu0 0.0
        %409 = vmatprep.subr.mxu0 0.0
        %410 = vmatpush1.msra.mxu0 0.0
        %411 = vmatprep.subr.mxu0 0.0
        %412 = vmatpush1.msra.mxu0 0.0
        %413 = vmatprep.subr.mxu0 0.0
        %414 = vmatpush1.msra.mxu0 0.0
        %415 = vmatprep.subr.mxu0 0.0
        %416 = vmatpush1.msra.mxu0 0.0
        %417 = vmatprep.subr.mxu0 0.0
        %418 = vmatpush1.msra.mxu0 0.0
        %419 = vmatprep.subr.mxu0 0.0
        %420 = vmatpush1.msra.mxu0 0.0
        %421 = vmatprep.mubr.f32.mxu0 0.0
        %422 = vmatmul.mubr.f32.gmra.mrb[0].mxu0 %v353
        %v423 = vpop.f32.mrb[0].mxu0
        %v424 = vadd.f32 %v349, %v423
        %v425 = vpop.f32.mrb[0].mxu0
        %426 = vdwg.mxu0
        %427 = vrot.lane.b32.xlu0 %v259, 124
        %v428 = vpop.permute.xlu0 %427
        %430 = vrot.lane.b32.xlu0 %v261, 124
        %v431 = vpop.permute.xlu0 %430
        %vm433 = vcmask 1014784
        %v434 = vsel %vm433, %v428, %v431
        %s435 = scalar_lea.vmem %s2, 16
        %v436 = vld [vmem:[%s435] sm:$0xff]
        %v438 = vsel %vm274, %v436, 0
        %v441 = vsel %vm278, %v434, 0
        %443 = vmatprep.subr.mxu0 0.0
        %444 = vmatpush1.msra.mxu0 %v441
        %445 = vmatprep.subr.mxu0 0.0
        %446 = vmatpush1.msra.mxu0 0.0
        %447 = vmatprep.subr.mxu0 0.0
        %448 = vmatpush1.msra.mxu0 0.0
        %449 = vmatprep.subr.mxu0 0.0
        %450 = vmatpush1.msra.mxu0 0.0
        %451 = vmatprep.subr.mxu0 0.0
        %452 = vmatpush1.msra.mxu0 0.0
        %453 = vmatprep.subr.mxu0 0.0
        %454 = vmatpush1.msra.mxu0 0.0
        %455 = vmatprep.subr.mxu0 0.0
        %456 = vmatpush1.msra.mxu0 0.0
        %457 = vmatprep.subr.mxu0 0.0
        %458 = vmatpush1.msra.mxu0 0.0
        %459 = vmatprep.subr.mxu0 0.0
        %460 = vmatpush1.msra.mxu0 0.0
        %461 = vmatprep.subr.mxu0 0.0
        %462 = vmatpush1.msra.mxu0 0.0
        %463 = vmatprep.subr.mxu0 0.0
        %464 = vmatpush1.msra.mxu0 0.0
        %465 = vmatprep.subr.mxu0 0.0
        %466 = vmatpush1.msra.mxu0 0.0
        %467 = vmatprep.subr.mxu0 0.0
        %468 = vmatpush1.msra.mxu0 0.0
        %469 = vmatprep.subr.mxu0 0.0
        %470 = vmatpush1.msra.mxu0 0.0
        %471 = vmatprep.subr.mxu0 0.0
        %472 = vmatpush1.msra.mxu0 0.0
        %473 = vmatprep.subr.mxu0 0.0
        %474 = vmatpush1.msra.mxu0 0.0
        %475 = vmatprep.subr.mxu0 0.0
        %476 = vmatpush1.msra.mxu0 0.0
        %477 = vmatprep.subr.mxu0 0.0
        %478 = vmatpush1.msra.mxu0 0.0
        %479 = vmatprep.subr.mxu0 0.0
        %480 = vmatpush1.msra.mxu0 0.0
        %481 = vmatprep.subr.mxu0 0.0
        %482 = vmatpush1.msra.mxu0 0.0
        %483 = vmatprep.subr.mxu0 0.0
        %484 = vmatpush1.msra.mxu0 0.0
        %485 = vmatprep.subr.mxu0 0.0
        %486 = vmatpush1.msra.mxu0 0.0
        %487 = vmatprep.subr.mxu0 0.0
        %488 = vmatpush1.msra.mxu0 0.0
        %489 = vmatprep.subr.mxu0 0.0
        %490 = vmatpush1.msra.mxu0 0.0
        %491 = vmatprep.subr.mxu0 0.0
        %492 = vmatpush1.msra.mxu0 0.0
        %493 = vmatprep.subr.mxu0 0.0
        %494 = vmatpush1.msra.mxu0 0.0
        %495 = vmatprep.subr.mxu0 0.0
        %496 = vmatpush1.msra.mxu0 0.0
        %497 = vmatprep.subr.mxu0 0.0
        %498 = vmatpush1.msra.mxu0 0.0
        %499 = vmatprep.subr.mxu0 0.0
        %500 = vmatpush1.msra.mxu0 0.0
        %501 = vmatprep.subr.mxu0 0.0
        %502 = vmatpush1.msra.mxu0 0.0
        %503 = vmatprep.subr.mxu0 0.0
        %504 = vmatpush1.msra.mxu0 0.0
        %505 = vmatprep.subr.mxu0 0.0
        %506 = vmatpush1.msra.mxu0 0.0
        %507 = vmatprep.mubr.f32.mxu0 0.0
        %508 = vmatmul.mubr.f32.gmra.mrb[0].mxu0 %v438
        %v509 = vpop.f32.mrb[0].mxu0
        %v510 = vadd.f32 0.0, %v509
        %v511 = vpop.f32.mrb[0].mxu0
        %512 = vdwg.mxu0
        %v513 = vadd.f32 %v424, %v510
        %v514 = vld [vmem:[%s3] sm:$0xff]
        %516 = vset.pattern.permute.xlu0 0
        %517 = vperm.xlu0 %516, %v514
        %v518 = vpop.permute.xlu0 %517
        %v520 = vadd.f32 %v513, %v518
        %v521 = vmax.f32 %v520, 0.0
        %522 = vst [vmem:[%s240] sm:$0xff] %v521
        %s523 = sand.u32 %s140, 1
        %s524 = scalar_lea.sflag [#allocation3], %s523
        %s525 = sand.u32 %s140, 1
        %s526 = smul.addr %s525, 8
        %s527 = scalar_lea.vmem [#allocation2], %s526
        // Predicated region
        $region37: #{tpu_custom_call.1} parent=35 // pred_check
          %p528 = pneg %p150
        $region38: #{tpu_custom_call.1} parent=35 // pred_check_branch
          %530 = sbr.rel (%p528) target = $region40
        $region39: #{tpu_custom_call.1} parent=35 // pred_region
          %s532 = ssub.s32 128, 128
          %533 = vsyncadd %s524, %s532
          %s534 = sadd.s32 %s23, %s22
          %s535 = smul.addr %s534, 128
          %s536 = scalar_lea.hbm %s4, %s535
          %s538 = sshll.u32 %s527, 4
          %s539 = int_to_ptr.vmem [resolvable:$true] %s538
          %541 = dma.vmem_to_hbm [thread:$0]  %s539, 128, %s536, %s524
        $region40: #{tpu_custom_call.1} parent=35 // pred_fallthru
          _
      $region36: #{tpu_custom_call.1} parent=5 // pred_fallthru
        _
      %p542 = scmp.le.s32.totalorder 2, %s13
      // Predicated region
      $region41: #{tpu_custom_call.1} parent=5 // pred_check
        %p543 = pneg %p542
      $region42: #{tpu_custom_call.1} parent=5 // pred_check_branch
        %545 = sbr.rel (%p543) target = $region44
      $region43: #{tpu_custom_call.1} parent=5 // pred_region
        %s546 = ssub.s32 %s13, 2
        // Predicated region
        $region45: #{tpu_custom_call.1} parent=43 // pred_check
          %p547 = pneg %p156
        $region46: #{tpu_custom_call.1} parent=43 // pred_check_branch
          %549 = sbr.rel (%p547) target = $region48
        $region47: #{tpu_custom_call.1} parent=43 // pred_region
          %s550 = sand.u32 %s141, 1
          %s551 = scalar_lea.sflag [#allocation3], %s550
          %s552 = sand.u32 %s141, 1
          %s553 = smul.addr %s552, 8
          %s554 = scalar_lea.vmem [#allocation2], %s553
          %555 = dma.done %s551, 128
        $region48: #{tpu_custom_call.1} parent=43 // pred_fallthru
          _
      $region44: #{tpu_custom_call.1} parent=5 // pred_fallthru
        _
    $region6: #{tpu_custom_call.1} parent=1 // loop_footer
      %s17 = sadd.s32 1, %s13
    $region7: #{tpu_custom_call.1} parent=1 // loop_footer_branch
      %12 = sbr.rel target = $region3
    $region8: #{tpu_custom_call.1} parent=1 // loop_exit
      _
    %556 = vsyncpa [#allocation3], 1
    %s557 = scalar_lea.sflag [#allocation3], 1
    %558 = vsyncpa %s557, 1

</llo_original>
